<compile_context>
chip_gen: v6e
topology: v6e:2x2x1
jax: 0.10.0
libtpu: 0.0.40
codegen_flags: <defaults>
</compile_context>

<pallas_src>
import functools

import jax
import jax.numpy as jnp
from jax.experimental import pallas as pl
from jax.experimental.pallas import tpu as pltpu


def _self_attention_kernel(*refs, seq_len, use_segmat):
    if use_segmat:
        (q_ref, v_ref, w1_ref, b1_ref, vw_ref, bv_ref, seg_ref,
         ctx_ref, score_ref) = refs
    else:
        (q_ref, v_ref, w1_ref, b1_ref, vw_ref, bv_ref,
         ctx_ref, score_ref) = refs

    bb = ctx_ref.shape[0]          # sequences in this block
    d = v_ref.shape[-1]

    # ---- W1 linear + tanh (MXU, f32 accumulate; bias/activation in f32) ----
    h = jnp.dot(q_ref[...], w1_ref[...], preferred_element_type=jnp.float32)
    h = jnp.tanh(h + b1_ref[...])                                     # (R, H)

    # ---- V linear (H -> 1): VPU multiply + lane (XLU) reduction ----
    logit = jnp.sum(h * vw_ref[...], axis=-1, keepdims=True) + bv_ref[...]
    # sigmoid = 1/(1+exp(-x)); exp and approx reciprocal both ride the EUP.
    # NOTE: same (non-stable) formulation as the PyTorch reference.
    score = pl.reciprocal(1.0 + jnp.exp(-logit), approx=True)         # (R, 1)

    # ---- per-sequence normalization + weighted sum over time ----
    sv = score * v_ref[...]                                           # (R, D)
    if use_segmat:
        # Ragged / non-8-aligned T: resident bf16 0/1 segment matrix (bb, R).
        seg = seg_ref[...]
        num = jnp.dot(seg, sv.astype(jnp.bfloat16),
                      preferred_element_type=jnp.float32)             # (bb, D)
        den = jnp.dot(seg, score.astype(jnp.bfloat16),
                      preferred_element_type=jnp.float32)             # (bb, 1)
    else:
        # T % 8 == 0: reshape only splits the leading (sublane-major) dim, so
        # it is layout-free; the axis-1 sum is a sublane reduction (XLU).
        num = jnp.sum(sv.reshape(bb, seq_len, d), axis=1)             # (bb, D)
        den = jnp.sum(score.reshape(bb, seq_len, 1), axis=1)          # (bb, 1)

    # ctx = sum_t (score_t / sum_t score_t) * values_t == num / den
    ctx_ref[...] = (num * pl.reciprocal(den, approx=True)).astype(ctx_ref.dtype)
    score_ref[...] = score.astype(score_ref.dtype)


def _step_vmem_bytes(bb, T, F, D, H, q_bytes, use_segmat):
    """Approximate per-grid-step VMEM footprint (bytes)."""
    R = bb * T
    # Double-buffered streaming inputs/outputs.
    stream = 2 * (R * F * q_bytes + R * D * 4 + bb * D * 4 + R * 4)
    # Single-buffered residents.
    resident = F * H * q_bytes + (2 * H + 2) * 4
    if use_segmat:
        resident += bb * R * 2
    # Live intermediates: h, sv, logits/scores.
    interm = R * H * 4 + R * D * 4 + 2 * R * 4
    return stream + resident + interm


def _pick_block_batches(B, T, F, D, H, q_bytes, use_segmat,
                        row_target, step_budget_bytes):
    fp = lambda bb: _step_vmem_bytes(bb, T, F, D, H, q_bytes, use_segmat)
    bb_target = max(1, row_target // max(T, 1))
    # Padding-free candidates: divisors of B that are B itself or multiples of
    # 8 (so non-full-extent row blocks stay (8,128)-aligned).
    cands = [d for d in range(1, B + 1)
             if B % d == 0 and (d == B or d % 8 == 0)]
    fitting = [d for d in cands if fp(d) <= step_budget_bytes]
    pool = fitting if fitting else cands
    below = [d for d in pool if d <= bb_target]
    bb = max(below) if below else min(pool)
    # Prefer >= 2 grid blocks so a dual-TensorCore chip (v7x) can shard the
    # "parallel" axis, as long as each step still carries a sizeable slab.
    if bb == B:
        split = [d for d in pool if d < B and d * T >= 256]
        if split:
            bb = max(split)
    # Escape hatch: if even the chosen divisor blows the budget, fall back to
    # a smaller 8-aligned block (the wrapper will pad the batch).
    if fp(bb) > step_budget_bytes and bb > 8:
        c = max(8, (min(bb, bb_target) // 8) * 8)
        while c > 8 and fp(c) > step_budget_bytes:
            c -= 8
        bb = min(bb, c)
    return bb


@functools.partial(
    jax.jit,
    static_argnames=("block_batches", "compute_dtype", "row_target"))
def self_attention(query, values, w1, b1, vw, bv, *,
                   block_batches=None,
                   compute_dtype=jnp.bfloat16,
                   row_target=1024):
    """Pallas-TPU forward of the PyTorch SelfAttention module.

    Returns (context_vector: (B, D) f32, score: (B, T, 1) f32).
    """
    B, T, F = query.shape
    Bv, Tv, D = values.shape
    assert (Bv, Tv) == (B, T), "query/values must share (batch, time)"
    H = w1.shape[1]

    q_bytes = jnp.dtype(compute_dtype).itemsize
    use_segmat = (T % 8 != 0)

    # Size the per-step footprint against ~24 MiB so the double-buffered
    # pipeline fits v7x's 32 MiB scoped-VMEM default (64 MiB physical); this
    # is automatically comfortable on v5e/v6e (128 MiB physical).
    step_budget = 24 << 20
    if block_batches is None:
        bb = _pick_block_batches(B, T, F, D, H, q_bytes, use_segmat,
                                 row_target, step_budget)
    else:
        bb = max(1, min(int(block_batches), B))
        if bb < B and bb % 8:
            bb = max(8, (bb // 8) * 8)

    n_blocks = (B + bb - 1) // bb
    Bp = n_blocks * bb                     # padded batch count (== B usually)
    R = bb * T                             # flattened rows per grid step

    # Only pad when B has no acceptable divisor: avoids a full HBM read+write
    # copy of query/values in the common case.  Padded rows are all-zero and
    # normalize to a finite ctx; they are sliced off below.
    if Bp != B:
        pad = ((0, Bp - B), (0, 0), (0, 0))
        query = jnp.pad(query, pad)
        values = jnp.pad(values, pad)

    # bf16 operands for the MXU-heavy matmul; everything else stays f32.
    q_flat = query.reshape(Bp * T, F).astype(compute_dtype)
    v_flat = values.reshape(Bp * T, D).astype(jnp.float32)
    w1c = w1.astype(compute_dtype)
    b1c = b1.reshape(1, H).astype(jnp.float32)
    vwc = vw.reshape(1, H).astype(jnp.float32)
    bvc = jnp.asarray(bv, jnp.float32).reshape(1, 1)

    # Constant index_map => single-buffer the residents (halves their VMEM).
    resident = pl.Buffered(1)
    in_specs = [
        pl.BlockSpec((R, F), lambda i: (i, 0)),                       # query
        pl.BlockSpec((R, D), lambda i: (i, 0)),                       # values
        pl.BlockSpec((F, H), lambda i: (0, 0), pipeline_mode=resident),  # W1
        pl.BlockSpec((1, H), lambda i: (0, 0), pipeline_mode=resident),  # b1
        pl.BlockSpec((1, H), lambda i: (0, 0), pipeline_mode=resident),  # Vw
        pl.BlockSpec((1, 1), lambda i: (0, 0), pipeline_mode=resident),  # Vb
    ]
    operands = [q_flat, v_flat, w1c, b1c, vwc, bvc]
    if use_segmat:
        # Precompute the 0/1 segment matrix once (identical every grid step).
        r_idx = jnp.arange(R, dtype=jnp.int32)
        seg = (r_idx[None, :] // T ==
               jnp.arange(bb, dtype=jnp.int32)[:, None]).astype(jnp.bfloat16)
        in_specs.append(
            pl.BlockSpec((bb, R), lambda i: (0, 0), pipeline_mode=resident))
        operands.append(seg)

    # Explicit scoped-VMEM limit derived from the chosen block sizes.
    footprint = _step_vmem_bytes(bb, T, F, D, H, q_bytes, use_segmat)
    vmem_limit = int(min(max(int(1.5 * footprint) + (8 << 20), 32 << 20),
                         48 << 20))

    # Advisory cost estimate so XLA schedules around the custom call.
    m = Bp * T
    flops = 2 * m * F * H + 4 * m * H + 3 * m + 2 * m * D + 2 * Bp * D
    if use_segmat:
        flops += 2 * Bp * R * (D + 1)
    transcendentals = m * H + 2 * m + Bp          # tanh + exp/rcp + rcp(den)
    bytes_accessed = (q_flat.size * q_bytes + v_flat.size * 4
                      + w1c.size * q_bytes + (2 * H + 1) * 4
                      + Bp * D * 4 + m * 4)

    ctx_p, score_p = pl.pallas_call(
        functools.partial(_self_attention_kernel,
                          seq_len=T, use_segmat=use_segmat),
        out_shape=(jax.ShapeDtypeStruct((Bp, D), jnp.float32),
                   jax.ShapeDtypeStruct((Bp * T, 1), jnp.float32)),
        grid_spec=pltpu.PrefetchScalarGridSpec(
            num_scalar_prefetch=0,
            grid=(n_blocks,),
            in_specs=in_specs,
            out_specs=[
                pl.BlockSpec((bb, D), lambda i: (i, 0)),   # context
                # (R, 1) is not lane-dense, but its data volume is tiny and a
                # lane-dense layout would require a sublane->lane transpose.
                pl.BlockSpec((R, 1), lambda i: (i, 0)),    # score
            ],
        ),
        compiler_params=pltpu.CompilerParams(
            dimension_semantics=("parallel",),
            vmem_limit_bytes=vmem_limit,
        ),
        cost_estimate=pl.CostEstimate(
            flops=flops,
            transcendentals=transcendentals,
            bytes_accessed=bytes_accessed),
    )(*operands)

    context = ctx_p[:B]
    score = score_p[:B * T].reshape(B, T, 1)
    return context, score


if __name__ == "__main__":
    # Small shapes consistent with the module: batch=2, seq=8, hidden=32.
    B, T = 2, 8
    in_units, out_units = 32, 32      # F, H
    d_values = 32                     # feature dim of `values`

    key = jax.random.PRNGKey(0)
    kq, kv, kw1, kb1, kvw, kbv = jax.random.split(key, 6)

    query = jax.random.normal(kq, (B, T, in_units), dtype=jnp.float32)
    values = jax.random.normal(kv, (B, T, d_values), dtype=jnp.float32)

    # Deterministic synthetic Linear parameters (stored transposed vs. torch).
    w1 = jax.random.normal(kw1, (in_units, out_units), jnp.float32) / jnp.sqrt(1.0 * in_units)
    b1 = jax.random.normal(kb1, (out_units,), jnp.float32) * 0.1
    vw = jax.random.normal(kvw, (1, out_units), jnp.float32) / jnp.sqrt(1.0 * out_units)
    bv = jax.random.normal(kbv, (), jnp.float32) * 0.1

    ctx, score = self_attention(query, values, w1, b1, vw, bv)
    jax.block_until_ready((ctx, score))

    # Pure-JAX f32 reference mirroring the PyTorch forward.
    h = jnp.tanh(query @ w1 + b1)
    score_ref = jax.nn.sigmoid(jnp.sum(h * vw, axis=-1, keepdims=True) + bv)
    attn_w = score_ref / jnp.sum(score_ref, axis=1, keepdims=True)
    ctx_ref = jnp.sum(attn_w * values, axis=1)

    assert ctx.shape == (B, d_values)
    assert score.shape == (B, T, 1)
    # bf16 matmul operands + approx EUP reciprocals => slightly loosened tol.
    assert jnp.allclose(score, score_ref, atol=2e-2, rtol=2e-2), "score mismatch"
    assert jnp.allclose(ctx, ctx_ref, atol=2e-2, rtol=2e-2), "context mismatch"

    print("KERNEL_OK")
</pallas_src>

<mosaic_0001>
module attributes {stable_mosaic.version = 11 : i64} {
  func.func @_self_attention_kernel(%arg0: i32, %arg1: memref<16x32xbf16, #tpu.memory_space<vmem>>, %arg2: memref<16x32xf32, #tpu.memory_space<vmem>>, %arg3: memref<32x32xbf16, #tpu.memory_space<vmem>>, %arg4: memref<1x32xf32, #tpu.memory_space<vmem>>, %arg5: memref<1x32xf32, #tpu.memory_space<vmem>>, %arg6: memref<1x1xf32, #tpu.memory_space<vmem>>, %arg7: memref<2x32xf32, #tpu.memory_space<vmem>>, %arg8: memref<16x1xf32, #tpu.memory_space<vmem>>) attributes {dimension_semantics = [#tpu.dimension_semantics<parallel>], iteration_bounds = array<i64: 1>, scalar_prefetch = 0 : i64, scratch_operands = 0 : i64, tpu.core_type = #tpu.core_type<tc>, window_params = [{transform_indices = @transform_0, window_bounds = array<i64: 16, 32>}, {transform_indices = @transform_1, window_bounds = array<i64: 16, 32>}, {pipeline_mode = #tpu.pipeline_mode<synchronous>, transform_indices = @transform_2, window_bounds = array<i64: 32, 32>}, {pipeline_mode = #tpu.pipeline_mode<synchronous>, transform_indices = @transform_3, window_bounds = array<i64: 1, 32>}, {pipeline_mode = #tpu.pipeline_mode<synchronous>, transform_indices = @transform_4, window_bounds = array<i64: 1, 32>}, {pipeline_mode = #tpu.pipeline_mode<synchronous>, transform_indices = @transform_5, window_bounds = array<i64: 1, 1>}, {transform_indices = @transform_6, window_bounds = array<i64: 2, 32>}, {transform_indices = @transform_7, window_bounds = array<i64: 16, 1>}]} {
    %c0 = arith.constant 0 : index
    %c0_0 = arith.constant 0 : index
    %0 = vector.load %arg1[%c0, %c0_0] : memref<16x32xbf16, #tpu.memory_space<vmem>>, vector<16x32xbf16>
    %c0_1 = arith.constant 0 : index
    %c0_2 = arith.constant 0 : index
    %1 = vector.load %arg3[%c0_1, %c0_2] : memref<32x32xbf16, #tpu.memory_space<vmem>>, vector<32x32xbf16>
    %cst = arith.constant dense<0.000000e+00> : vector<16x32xf32>
    %2 = tpu.matmul %0, %1, %cst {dimension_numbers = #tpu.dot_dimension_numbers<[1], [0], [0], [1], [0, 0, 1, 1], [], []>} : vector<16x32xbf16>, vector<32x32xbf16>, vector<16x32xf32> -> vector<16x32xf32>
    %c0_3 = arith.constant 0 : index
    %c0_4 = arith.constant 0 : index
    %3 = vector.load %arg4[%c0_3, %c0_4] : memref<1x32xf32, #tpu.memory_space<vmem>>, vector<1x32xf32>
    %4 = vector.broadcast %3 : vector<1x32xf32> to vector<16x32xf32>
    %5 = arith.addf %2, %4 : vector<16x32xf32>
    %6 = math.tanh %5 : vector<16x32xf32>
    %c0_5 = arith.constant 0 : index
    %c0_6 = arith.constant 0 : index
    %7 = vector.load %arg5[%c0_5, %c0_6] : memref<1x32xf32, #tpu.memory_space<vmem>>, vector<1x32xf32>
    %8 = vector.broadcast %7 : vector<1x32xf32> to vector<16x32xf32>
    %9 = arith.mulf %6, %8 : vector<16x32xf32>
    %cst_7 = arith.constant dense<0.000000e+00> : vector<16xf32>
    %10 = vector.multi_reduction <add>, %9, %cst_7 [1] : vector<16x32xf32> to vector<16xf32>
    %11 = vector.shape_cast %10 : vector<16xf32> to vector<16x1xf32>
    %c0_8 = arith.constant 0 : index
    %c0_9 = arith.constant 0 : index
    %12 = vector.load %arg6[%c0_8, %c0_9] : memref<1x1xf32, #tpu.memory_space<vmem>>, vector<1x1xf32>
    %13 = vector.broadcast %12 : vector<1x1xf32> to vector<16x1xf32>
    %14 = arith.addf %11, %13 : vector<16x1xf32>
    %cst_10 = arith.constant 0.000000e+00 : f32
    %15 = vector.broadcast %cst_10 : f32 to vector<16x1xf32>
    %16 = arith.subf %15, %14 : vector<16x1xf32>
    %17 = math.exp %16 : vector<16x1xf32>
    %cst_11 = arith.constant 1.000000e+00 : f32
    %18 = vector.broadcast %cst_11 : f32 to vector<16x1xf32>
    %19 = arith.addf %18, %17 : vector<16x1xf32>
    %20 = tpu.reciprocal %19 {approx = true} : vector<16x1xf32> -> vector<16x1xf32>
    %c0_12 = arith.constant 0 : index
    %c0_13 = arith.constant 0 : index
    %21 = vector.load %arg2[%c0_12, %c0_13] : memref<16x32xf32, #tpu.memory_space<vmem>>, vector<16x32xf32>
    %22 = vector.broadcast %20 : vector<16x1xf32> to vector<16x32xf32>
    %23 = arith.mulf %22, %21 : vector<16x32xf32>
    %24 = vector.shape_cast %23 : vector<16x32xf32> to vector<2x8x32xf32>
    %cst_14 = arith.constant dense<0.000000e+00> : vector<2x32xf32>
    %25 = vector.multi_reduction <add>, %24, %cst_14 [1] : vector<2x8x32xf32> to vector<2x32xf32>
    %26 = vector.shape_cast %20 : vector<16x1xf32> to vector<2x8x1xf32>
    %cst_15 = arith.constant dense<0.000000e+00> : vector<2x1xf32>
    %27 = vector.multi_reduction <add>, %26, %cst_15 [1] : vector<2x8x1xf32> to vector<2x1xf32>
    %28 = tpu.reciprocal %27 {approx = true} : vector<2x1xf32> -> vector<2x1xf32>
    %29 = vector.broadcast %28 : vector<2x1xf32> to vector<2x32xf32>
    %30 = arith.mulf %25, %29 : vector<2x32xf32>
    %c0_16 = arith.constant 0 : index
    %c0_17 = arith.constant 0 : index
    %31 = vector.load %arg7[%c0_16, %c0_17] : memref<2x32xf32, #tpu.memory_space<vmem>>, vector<2x32xf32>
    tpu.vector_store %arg7[%c0_16, %c0_17], %30 {strides = array<i32>} : memref<2x32xf32, #tpu.memory_space<vmem>>, vector<2x32xf32>,
    %c0_18 = arith.constant 0 : index
    %c0_19 = arith.constant 0 : index
    %32 = vector.load %arg8[%c0_18, %c0_19] : memref<16x1xf32, #tpu.memory_space<vmem>>, vector<16x1xf32>
    tpu.vector_store %arg8[%c0_18, %c0_19], %20 {strides = array<i32>} : memref<16x1xf32, #tpu.memory_space<vmem>>, vector<16x1xf32>,
    return
  }
  func.func @transform_0(%arg0: i32) -> (i32, i32) {
    %c0_i32 = arith.constant 0 : i32
    %c0_i32_0 = arith.constant 0 : i32
    return %arg0, %c0_i32 : i32, i32
  }
  func.func @transform_1(%arg0: i32) -> (i32, i32) {
    %c0_i32 = arith.constant 0 : i32
    %c0_i32_0 = arith.constant 0 : i32
    return %arg0, %c0_i32 : i32, i32
  }
  func.func @transform_2(%arg0: i32) -> (i32, i32) {
    %c0_i32 = arith.constant 0 : i32
    %c0_i32_0 = arith.constant 0 : i32
    %c0_i32_1 = arith.constant 0 : i32
    return %c0_i32, %c0_i32_0 : i32, i32
  }
  func.func @transform_3(%arg0: i32) -> (i32, i32) {
    %c0_i32 = arith.constant 0 : i32
    %c0_i32_0 = arith.constant 0 : i32
    %c0_i32_1 = arith.constant 0 : i32
    return %c0_i32, %c0_i32_0 : i32, i32
  }
  func.func @transform_4(%arg0: i32) -> (i32, i32) {
    %c0_i32 = arith.constant 0 : i32
    %c0_i32_0 = arith.constant 0 : i32
    %c0_i32_1 = arith.constant 0 : i32
    return %c0_i32, %c0_i32_0 : i32, i32
  }
  func.func @transform_5(%arg0: i32) -> (i32, i32) {
    %c0_i32 = arith.constant 0 : i32
    %c0_i32_0 = arith.constant 0 : i32
    %c0_i32_1 = arith.constant 0 : i32
    return %c0_i32, %c0_i32_0 : i32, i32
  }
  func.func @transform_6(%arg0: i32) -> (i32, i32) {
    %c0_i32 = arith.constant 0 : i32
    %c0_i32_0 = arith.constant 0 : i32
    return %arg0, %c0_i32 : i32, i32
  }
  func.func @transform_7(%arg0: i32) -> (i32, i32) {
    %c0_i32 = arith.constant 0 : i32
    %c0_i32_0 = arith.constant 0 : i32
    return %arg0, %c0_i32 : i32, i32
  }
}

</mosaic_0001>

<llo_original>
// kernel: self_attention.1
$region0: #{self_attention.1}
  #allocation0 [shape = 'u32[]', space=smem, size = 0x4, offset = 0x4, fixed_abs, tag = 'smem constant byte address 0x4 - core index']
  #allocation1 [shape = 'u32[144,128]{1,0:T(1,128)}', space=vmem, size = 0x12000, scoped, tag = 'internal scratch']
  #allocation2 [shape = 'f32[1,1]{1,0:T(1,128)S(1)}', space=vmem, size = 0x200, scoped, tag = 'scoped memory for self_attention.1']
  %s0 = inlined_call_operand.vmem [shape: bf16[16,32], index: 0, kind: input, shape index: {}]
  %s1 = inlined_call_operand.vmem [shape: f32[16,32], index: 1, kind: input, shape index: {}]
  %s2 = inlined_call_operand.vmem [shape: bf16[32,32], index: 2, kind: input, shape index: {}]
  %s3 = inlined_call_operand.vmem [shape: f32[1,32], index: 3, kind: input, shape index: {}]
  %s4 = inlined_call_operand.vmem [shape: f32[1,32], index: 4, kind: input, shape index: {}]
  %s5 = inlined_call_operand.<no memory space> [shape: f32[1,1], index: 5, kind: input, shape index: {}]
  %s6 = inlined_call_operand.hbm [shape: f32[2,32], index: 6, kind: output, shape index: {0}]
  %s7 = inlined_call_operand.vmem [shape: f32[16,1], index: 7, kind: output, shape index: {1}]
  %8 = xla_tuple %s6, %s7
  %s9 = sld [smem:[#allocation0]]
  $region42: #{self_attention.1} parent=0
    _
  %s11 = ssub.s32 1, %s9
  %s12 = scalar_select 0, %s11, %s9
  %v13 = vstv %s5
  %14 = vst [vmem:[#allocation2] sm:$0x1] %v13
  $region1: #{self_attention.1} parent=0
    #allocation3 [shape = 'u8[1024]{0}', space=vmem, size = 0x400, scoped, tag = 'output window, operand 0, single buffered']
    #allocation4 [shape = 's32[1]{0}', space=sflag, size = 0x4, scoped, tag = 'scoped memory for self_attention.1']
    %15 = vsyncpa [#allocation4], 0
    // Predicated region
    $region2: #{self_attention.1} parent=1 // pred_check
      _
    $region3: #{self_attention.1} parent=1 // pred_check_branch
      %17 = sbr.rel (0) target = $region5
    $region4: #{self_attention.1} parent=1 // pred_region
      _
    $region5: #{self_attention.1} parent=1 // pred_fallthru
      _
    // Predicated region
    $region6: #{self_attention.1} parent=1 // pred_check
      _
    $region7: #{self_attention.1} parent=1 // pred_check_branch
      %19 = sbr.rel (0) target = $region9
    $region8: #{self_attention.1} parent=1 // pred_region
      _
    $region9: #{self_attention.1} parent=1 // pred_fallthru
      _
    // Predicated region
    $region10: #{self_attention.1} parent=1 // pred_check
      _
    $region11: #{self_attention.1} parent=1 // pred_check_branch
      %21 = sbr.rel (0) target = $region13
    $region12: #{self_attention.1} parent=1 // pred_region
      _
    $region13: #{self_attention.1} parent=1 // pred_fallthru
      _
    // Predicated region
    $region14: #{self_attention.1} parent=1 // pred_check
      _
    $region15: #{self_attention.1} parent=1 // pred_check_branch
      %23 = sbr.rel (0) target = $region17
    $region16: #{self_attention.1} parent=1 // pred_region
      _
    $region17: #{self_attention.1} parent=1 // pred_fallthru
      _
    // Predicated region
    $region18: #{self_attention.1} parent=1 // pred_check
      _
    $region19: #{self_attention.1} parent=1 // pred_check_branch
      %25 = sbr.rel (0) target = $region21
    $region20: #{self_attention.1} parent=1 // pred_region
      _
    $region21: #{self_attention.1} parent=1 // pred_fallthru
      _
    // Predicated region
    $region22: #{self_attention.1} parent=1 // pred_check
      _
    $region23: #{self_attention.1} parent=1 // pred_check_branch
      %27 = sbr.rel (0) target = $region25
    $region24: #{self_attention.1} parent=1 // pred_region
      _
    $region25: #{self_attention.1} parent=1 // pred_fallthru
      _
    %v29 = vld [vmem:[%s0] sm:$0xf]
    %v30 = vld [vmem:[%s0 + $0x4] sm:$0xf]
    %v31 = vld [vmem:[%s2] sm:$0xf]
    %v32 = vld [vmem:[%s2 + $0x4] sm:$0xf]
    %v33 = vld [vmem:[%s2 + $0x8] sm:$0xf]
    %v34 = vld [vmem:[%s2 + $0xc] sm:$0xf]
    %v35 = vld [vmem:[%s3] sm:$0x1]
    %v37 = vlaneseq
    %v38 = vshrl.u32 %v37, 7
    %v39 = vsub.s32 0, %v38
    %v40 = vrot.slane %v35, %v39
    %v44 = vunpack.c.l.b16 %v29
    %v45 = vunpack.c.l.b16 %v30
    %v46 = vpack.c.b16 %v45, %v44
    %v51 = vunpack.c.l.b16 %v31
    %v52 = vunpack.c.l.b16 %v32
    %v53 = vunpack.c.l.b16 %v33
    %v54 = vunpack.c.l.b16 %v34
    %v55 = vpack.c.b16 %v52, %v51
    %v56 = vpack.c.b16 %v54, %v53
    %vm59 = vcmask 261120
    %v61 = vsel %vm59, %v46, 0
    %63 = vmatprep.subr.bf16.mxu0 0
    %64 = vmatpush1.bf16.msra.mxu0 0
    %65 = vmatprep.subr.bf16.mxu0 0
    %66 = vmatpush1.bf16.msra.mxu0 0
    %67 = vmatprep.subr.bf16.mxu0 0
    %68 = vmatpush1.bf16.msra.mxu0 0
    %69 = vmatprep.subr.bf16.mxu0 0
    %70 = vmatpush1.bf16.msra.mxu0 0
    %71 = vmatprep.subr.bf16.mxu0 0
    %72 = vmatpush1.bf16.msra.mxu0 0
    %73 = vmatprep.subr.bf16.mxu0 0
    %74 = vmatpush1.bf16.msra.mxu0 0
    %75 = vmatprep.subr.bf16.mxu0 0
    %76 = vmatpush1.bf16.msra.mxu0 %v56
    %77 = vmatprep.subr.bf16.mxu0 0
    %78 = vmatpush1.bf16.msra.mxu0 %v55
    %79 = vmatprep.subr.bf16.mxu0 0
    %80 = vmatpush2.bf16.msra.mxu0 0
    %81 = vmatprep.subr.bf16.mxu0 0
    %82 = vmatpush2.bf16.msra.mxu0 0
    %83 = vmatprep.subr.bf16.mxu0 0
    %84 = vmatpush2.bf16.msra.mxu0 0
    %85 = vmatprep.subr.bf16.mxu0 0
    %86 = vmatpush2.bf16.msra.mxu0 0
    %87 = vmatprep.subr.bf16.mxu0 0
    %88 = vmatpush2.bf16.msra.mxu0 0
    %89 = vmatprep.subr.bf16.mxu0 0
    %90 = vmatpush2.bf16.msra.mxu0 0
    %91 = vmatprep.subr.bf16.mxu0 0
    %92 = vmatpush2.bf16.msra.mxu0 0
    %93 = vmatprep.subr.bf16.mxu0 0
    %94 = vmatpush2.bf16.msra.mxu0 0
    %95 = vmatprep.mubr.bf16.mxu0 0
    %96 = vmatmul.mubr.bf16.gmra.mxu0 %v61
    %v97 = vpop.f32.mrf.mxu0
    %v98 = vadd.f32 %v40, %v97
    %v99 = vpop.f32.mrf.mxu0
    %v100 = vpop.f32.mrf.mxu0
    %v101 = vadd.f32 %v40, %v100
    %v102 = vpop.f32.mrf.mxu0
    %103 = vdwg.mxu0
    %v104 = vtanh.pop %v98
    %v105 = vtanh.pop %v101
    %v106 = vld [vmem:[%s4] sm:$0x1]
    %v108 = vlaneseq
    %v109 = vshrl.u32 %v108, 7
    %v110 = vsub.s32 0, %v109
    %v111 = vrot.slane %v106, %v110
    %v113 = vmul.f32 %v104, %v111
    %v114 = vmul.f32 %v105, %v111
    %v115 = vsel %vm59, %v113, 0.0
    %116 = vadd.xlane.f32.xlu0 %v115
    %v117 = vpop.xlane.xlu0 %116
    %v118 = vsel %vm59, %v114, 0.0
    %119 = vadd.xlane.f32.xlu0 %v118
    %v120 = vpop.xlane.xlu0 %119
    %v121 = vld [vmem:[#allocation2] sm:$0x1]
    %v123 = vlaneseq
    %v124 = vshrl.u32 %v123, 7
    %v125 = vsub.s32 0, %v124
    %v126 = vrot.slane %v121, %v125
    %v128 = vadd.f32 %v117, %v126
    %v129 = vadd.f32 %v120, %v126
    %v130 = vsub.f32 0.0, %v128
    %v131 = vsub.f32 0.0, %v129
    %v132 = vmul.f32 %v130, 1.442695
    %v133 = vpow.pop %v132
    %v134 = vmul.f32 %v131, 1.442695
    %v135 = vpow.pop %v134
    %v136 = vadd.f32 %v133, 1.0
    %v137 = vadd.f32 %v135, 1.0
    %v138 = vrcp.pop %v136
    %v139 = vrcp.pop %v137
    %v140 = vld [vmem:[%s1] sm:$0xff]
    %v141 = vld [vmem:[%s1 + $0x8] sm:$0xff]
    %143 = vset.pattern.permute.xlu0 0
    %144 = vperm.xlu0 %143, %v138
    %v145 = vpop.permute.xlu0 %144
    %148 = vset.pattern.permute.xlu0 0
    %149 = vperm.xlu0 %148, %v139
    %v150 = vpop.permute.xlu0 %149
    %v152 = vmul.f32 %v145, %v140
    %v153 = vmul.f32 %v150, %v141
    %v154 = vsel %vm59, %v152, 0.0
    %v155 = vrot.slane %v154, 4
    %v156 = vadd.f32 %v154, %v155
    %v157 = vrot.slane %v156, 2
    %v158 = vadd.f32 %v156, %v157
    %v159 = vrot.slane %v158, 1
    %v160 = vadd.f32 %v158, %v159
    %v161 = vsel %vm59, %v153, 0.0
    %v162 = vrot.slane %v161, 4
    %v163 = vadd.f32 %v161, %v162
    %v164 = vrot.slane %v163, 2
    %v165 = vadd.f32 %v163, %v164
    %v166 = vrot.slane %v165, 1
    %v167 = vadd.f32 %v165, %v166
    %vm168 = vcmask 7168
    %v169 = vsel %vm168, %v138, 0.0
    %v170 = vrot.slane %v169, 4
    %v171 = vadd.f32 %v169, %v170
    %v172 = vrot.slane %v171, 2
    %v173 = vadd.f32 %v171, %v172
    %v174 = vrot.slane %v173, 1
    %v175 = vadd.f32 %v173, %v174
    %v176 = vsel %vm168, %v139, 0.0
    %v177 = vrot.slane %v176, 4
    %v178 = vadd.f32 %v176, %v177
    %v179 = vrot.slane %v178, 2
    %v180 = vadd.f32 %v178, %v179
    %v181 = vrot.slane %v180, 1
    %v182 = vadd.f32 %v180, %v181
    %v183 = vrcp.pop %v175
    %v184 = vrcp.pop %v182
    %186 = vset.pattern.permute.xlu0 0
    %187 = vperm.xlu0 %186, %v183
    %v188 = vpop.permute.xlu0 %187
    %191 = vset.pattern.permute.xlu0 0
    %192 = vperm.xlu0 %191, %v184
    %v193 = vpop.permute.xlu0 %192
    %v195 = vmul.f32 %v160, %v188
    %v196 = vmul.f32 %v167, %v193
    %vm199 = vcmask 1041409
    %v200 = vsel %vm199, %v196, %v195
    %vm202 = vcmask 254976
    %203 = vst.msk [vmem:[#allocation3] sm:$0x3] %vm202, %v200
    %204 = vst.msk [vmem:[%s7] sm:$0xff] %vm168, %v138
    %205 = vst.msk [vmem:[%s7 + $0x8] sm:$0xff] %vm168, %v139
    // Predicated region
    $region26: #{self_attention.1} parent=1 // pred_check
      _
    $region27: #{self_attention.1} parent=1 // pred_check_branch
      %207 = sbr.rel (0) target = $region29
    $region28: #{self_attention.1} parent=1 // pred_region
      %s209 = ssub.s32 32, 32
      %210 = vsyncadd [#allocation4], %s209
      %s212 = sshll.u32 [#allocation3], 4
      %s213 = int_to_ptr.vmem [resolvable:$true] %s212
      %215 = dma.vmem_to_hbm [thread:$0]  %s213, 32, %s6, [#allocation4]
    $region29: #{self_attention.1} parent=1 // pred_fallthru
      _
    // Predicated region
    $region30: #{self_attention.1} parent=1 // pred_check
      _
    $region31: #{self_attention.1} parent=1 // pred_check_branch
      %217 = sbr.rel (0) target = $region33
    $region32: #{self_attention.1} parent=1 // pred_region
      _
    $region33: #{self_attention.1} parent=1 // pred_fallthru
      _
    // Predicated region
    $region34: #{self_attention.1} parent=1 // pred_check
      _
    $region35: #{self_attention.1} parent=1 // pred_check_branch
      %219 = sbr.rel (0) target = $region37
    $region36: #{self_attention.1} parent=1 // pred_region
      %220 = dma.done [#allocation4], 32
    $region37: #{self_attention.1} parent=1 // pred_fallthru
      _
    // Predicated region
    $region38: #{self_attention.1} parent=1 // pred_check
      _
    $region39: #{self_attention.1} parent=1 // pred_check_branch
      %222 = sbr.rel (0) target = $region41
    $region40: #{self_attention.1} parent=1 // pred_region
      _
    $region41: #{self_attention.1} parent=1 // pred_fallthru
      _
    %223 = vsyncpa [#allocation4], 1

</llo_original>
